<compile_context>
chip_gen: v5e
topology: v5e:2x2
jax: 0.10.0
libtpu: 0.0.40
codegen_flags: <defaults>
</compile_context>

<pallas_src>
import functools

import jax
import jax.numpy as jnp
from jax.experimental import pallas as pl
from jax.experimental.pallas import tpu as pltpu


def _round_up(n: int, m: int) -> int:
    return ((n + m - 1) // m) * m


def _pick_tile(n: int, max_tile: int, align: int, min_tile: int | None = None) -> int:
    """Tile size (multiple of `align`, <= max_tile) minimizing padding of n.

    If n fits in one tile use the full aligned extent; otherwise scan aligned
    candidates and minimize cdiv(n, t) * t, breaking ties toward larger tiles
    (fewer grid steps, better pipelining).
    """
    if n <= max_tile:
        return _round_up(n, align)
    min_tile = max(min_tile or align, align)
    min_tile = min(min_tile, max_tile)
    best_t, best_total = None, None
    for t in range(min_tile, max_tile + 1, align):
        total = -(-n // t) * t
        if best_total is None or total <= best_total:
            best_t, best_total = t, total
    return best_t


def _gcn_kernel(adj_ref, x_ref, w_ref, o_ref, acc_ref, *,
                tk, n_nodes, mask_k, compute_dtype):
    # adj_ref: (tm, tk)          HBM dtype (f32/bf16) -- adjacency tile
    # x_ref:   (n_k_p, f_in_p)   bf16, per-batch resident [x | 1 | 0-pad]
    # w_ref:   (f_in_p, f_out_p) f32, [W^T ; bias ; 0-pad]
    # o_ref:   (tm, f_out_p)     output tile
    # acc_ref: (tm, f_in_p)      f32 scratch accumulator
    k = pl.program_id(2)

    @pl.when(k == 0)
    def _init():
        acc_ref[...] = jnp.zeros_like(acc_ref)

    a = adj_ref[...]
    if mask_k:
        # Edge k-tile of an unaligned N: zero out-of-range columns (the
        # corresponding adj data was never padded in HBM).
        col = k * tk + jax.lax.broadcasted_iota(jnp.int32, a.shape, 1)
        a = jnp.where(col < n_nodes, a, jnp.zeros_like(a))
    a = a.astype(compute_dtype)  # bf16 MXU feed; f32 accumulation below.

    k_start = pl.multiple_of(k * tk, tk)
    xs = x_ref[pl.ds(k_start, tk), :]

    # Dominant matmul: (tm, tk) @ (tk, f_in_p), bf16 operands, f32 accumulate.
    acc_ref[...] += jnp.dot(a, xs, preferred_element_type=jnp.float32)

    @pl.when(k == pl.num_programs(2) - 1)
    def _finalize():
        # Linear layer + bias applied once per row tile: the ones column of
        # x_aug picks up the bias row of W_aug, so this equals adj @ (xW^T+b).
        y = jnp.dot(acc_ref[...], w_ref[...],
                    preferred_element_type=jnp.float32)
        o_ref[...] = jnp.maximum(y, 0.0).astype(o_ref.dtype)


def gcn_layer(x, adj, weight, bias, *, block_rows=512, block_k=1024,
              compute_dtype=jnp.bfloat16, out_dtype=None):
    """x: (B, N, F_in), adj: (B, N, N), weight: (F_out, F_in), bias: (F_out,)."""
    B, N, F_in = x.shape
    F_out = weight.shape[0]
    out_dtype = out_dtype or x.dtype
    block_rows = max(block_rows, 8)
    block_k = max(block_k, 128)

    # Tile choices minimizing round-up padding of the node dimension.
    tm = _pick_tile(N, block_rows, 8, min_tile=128)     # output-row tile
    tk = _pick_tile(N, block_k, 128, min_tile=512)      # contraction tile
    n_rows_p = -(-N // tm) * tm
    n_k_p = -(-N // tk) * tk
    f_in_p = _round_up(F_in + 1, 128)   # +1 for the bias/ones column
    f_out_p = _round_up(F_out, 128)     # lane-dense output stores
    mask_k = (n_k_p != N)

    # Cheap glue on the SMALL operands only; the O(N^2) adjacency is passed to
    # the kernel exactly as provided (no pad / cast prepass).
    ones = jnp.ones((B, N, 1), x.dtype)
    x_aug = jnp.concatenate([x, ones], axis=-1)                    # (B,N,F_in+1)
    x_aug = jnp.pad(x_aug, ((0, 0), (0, n_k_p - N),
                            (0, f_in_p - (F_in + 1)))).astype(compute_dtype)

    w_aug = jnp.zeros((f_in_p, f_out_p), jnp.float32)
    w_aug = w_aug.at[:F_in, :F_out].set(weight.T.astype(jnp.float32))
    w_aug = w_aug.at[F_in, :F_out].set(bias.astype(jnp.float32))

    grid = (B, n_rows_p // tm, n_k_p // tk)

    kernel = functools.partial(_gcn_kernel, tk=tk, n_nodes=N, mask_k=mask_k,
                               compute_dtype=compute_dtype)

    # VMEM footprint (double-buffered pipeline buffers + scratch) -> limit.
    adj_isz = jnp.dtype(adj.dtype).itemsize
    x_isz = jnp.dtype(compute_dtype).itemsize
    out_isz = jnp.dtype(out_dtype).itemsize
    vmem_need = (2 * tm * tk * adj_isz            # adj tiles
                 + 2 * n_k_p * f_in_p * x_isz     # resident x (per batch)
                 + 2 * tm * f_out_p * out_isz     # output tiles
                 + 2 * f_in_p * f_out_p * 4       # W_aug
                 + tm * f_in_p * 4)               # accumulator
    vmem_limit = int(min(max(2 * vmem_need, 32 * 1024 * 1024),
                         48 * 1024 * 1024))       # safe on v5e/v6e/v7x

    grid_spec = pltpu.PrefetchScalarGridSpec(
        num_scalar_prefetch=0,
        grid=grid,
        in_specs=[
            # Adjacency tile: the only O(N^2) stream; consumed in its HBM
            # dtype, masked/cast in-kernel.
            pl.BlockSpec((pl.Squeezed(), tm, tk), lambda b, i, k: (b, i, k)),
            # Node features: per-batch resident block (index independent of
            # i/k) -> DMA'd once per batch, not once per row tile.
            pl.BlockSpec((pl.Squeezed(), n_k_p, f_in_p),
                         lambda b, i, k: (b, 0, 0)),
            # Fused [W^T ; bias]: tiny, resident for the whole call.
            pl.BlockSpec((f_in_p, f_out_p), lambda b, i, k: (0, 0)),
        ],
        out_specs=pl.BlockSpec((pl.Squeezed(), tm, f_out_p),
                               lambda b, i, k: (b, i, 0)),
        scratch_shapes=[pltpu.VMEM((tm, f_in_p), jnp.float32)],
    )

    out_p = pl.pallas_call(
        kernel,
        out_shape=jax.ShapeDtypeStruct((B, n_rows_p, f_out_p), out_dtype),
        grid_spec=grid_spec,
        compiler_params=pltpu.CompilerParams(
            dimension_semantics=("parallel", "parallel", "arbitrary"),
            vmem_limit_bytes=vmem_limit,
        ),
    )(adj, x_aug, w_aug)

    if n_rows_p == N and f_out_p == F_out:
        return out_p                       # already exact: no slice pass
    return out_p[:, :N, :F_out]


# ------------------------- references & self-test ---------------------------

def gcn_reference(x, adj, weight, bias):
    h = jnp.einsum("bnf,of->bno", x, weight,
                   precision=jax.lax.Precision.HIGHEST) + bias
    y = jnp.einsum("bnm,bmo->bno", adj, h,
                   precision=jax.lax.Precision.HIGHEST)
    return jnp.maximum(y, 0.0)


def gcn_reference_bf16(x, adj, weight, bias):
    # Same bf16 input rounding the kernel applies (adj/x), f32 math otherwise.
    xb = x.astype(jnp.bfloat16).astype(jnp.float32)
    ab = adj.astype(jnp.bfloat16).astype(jnp.float32)
    return gcn_reference(xb, ab, weight, bias)


def _make_inputs(key, B, N, F_in, F_out):
    kx, ka, kw, kb = jax.random.split(key, 4)
    x = jax.random.normal(kx, (B, N, F_in), dtype=jnp.float32)
    adj = jax.random.uniform(ka, (B, N, N), dtype=jnp.float32)
    bound = 1.0 / (F_in ** 0.5)
    weight = jax.random.uniform(kw, (F_out, F_in), minval=-bound, maxval=bound,
                                dtype=jnp.float32)
    bias = jax.random.uniform(kb, (F_out,), minval=-bound, maxval=bound,
                              dtype=jnp.float32)
    return x, adj, weight, bias


if __name__ == "__main__":
    key = jax.random.PRNGKey(0)
    k1, k2, k3 = jax.random.split(key, 3)

    # 1) Small shapes consistent with the module's forward.
    B, N, F_in, F_out = 2, 8, 16, 32
    x, adj, weight, bias = _make_inputs(k1, B, N, F_in, F_out)
    out = jax.block_until_ready(gcn_layer(x, adj, weight, bias))
    assert out.shape == (B, N, F_out)
    assert jnp.allclose(out, gcn_reference_bf16(x, adj, weight, bias),
                        atol=1e-2, rtol=1e-2)
    assert jnp.allclose(out, gcn_reference(x, adj, weight, bias),
                        atol=5e-2, rtol=5e-2)

    # 2) Unaligned N, multiple row/k tiles: exercises in-kernel edge masking,
    #    f32->bf16 in-kernel cast, accumulation and output slicing.
    B2, N2, F_in2, F_out2 = 2, 300, 48, 160
    x2, adj2, w2, b2 = _make_inputs(k2, B2, N2, F_in2, F_out2)
    out2 = jax.block_until_ready(
        gcn_layer(x2, adj2, w2, b2, block_rows=128, block_k=128))
    assert out2.shape == (B2, N2, F_out2)
    assert jnp.allclose(out2, gcn_reference_bf16(x2, adj2, w2, b2),
                        atol=1e-2, rtol=1e-2)

    # 3) Tile-aligned N / F_out with default blocks: no padding, no slice pass.
    B3, N3, F_in3, F_out3 = 2, 384, 48, 128
    x3, adj3, w3, b3 = _make_inputs(k3, B3, N3, F_in3, F_out3)
    out3 = jax.block_until_ready(gcn_layer(x3, adj3, w3, b3))
    assert out3.shape == (B3, N3, F_out3)
    assert jnp.allclose(out3, gcn_reference_bf16(x3, adj3, w3, b3),
                        atol=1e-2, rtol=1e-2)

    print("KERNEL_OK")
</pallas_src>

<mosaic_0001>
module attributes {stable_mosaic.version = 11 : i64} {
  func.func @_gcn_kernel(%arg0: i32, %arg1: i32, %arg2: i32, %arg3: memref<1x8x128xf32, #tpu.memory_space<vmem>>, %arg4: memref<1x128x128xbf16, #tpu.memory_space<vmem>>, %arg5: memref<128x128xf32, #tpu.memory_space<vmem>>, %arg6: memref<1x8x128xf32, #tpu.memory_space<vmem>>, %arg7: memref<8x128xf32, #tpu.memory_space<vmem>>) attributes {dimension_semantics = [#tpu.dimension_semantics<parallel>, #tpu.dimension_semantics<parallel>, #tpu.dimension_semantics<arbitrary>], iteration_bounds = array<i64: 2, 1, 1>, scalar_prefetch = 0 : i64, scratch_operands = 1 : i64, tpu.core_type = #tpu.core_type<tc>, window_params = [{transform_indices = @transform_0, window_bounds = array<i64: 1, 8, 128>}, {transform_indices = @transform_1, window_bounds = array<i64: 1, 128, 128>}, {pipeline_mode = #tpu.pipeline_mode<synchronous>, transform_indices = @transform_2, window_bounds = array<i64: 128, 128>}, {transform_indices = @transform_3, window_bounds = array<i64: 1, 8, 128>}]} {
    %c0_i32 = arith.constant 0 : i32
    %0 = arith.cmpi eq, %arg2, %c0_i32 : i32
    %1 = arith.extui %0 : i1 to i32
    %c0_i32_0 = arith.constant 0 : i32
    %2 = arith.cmpi ne, %1, %c0_i32_0 : i32
    scf.if %2 {
      %cst_13 = arith.constant 0.000000e+00 : f32
      %26 = vector.broadcast %cst_13 : f32 to vector<8x128xf32>
      %c0_14 = arith.constant 0 : index
      %c0_15 = arith.constant 0 : index
      %27 = vector.load %arg7[%c0_14, %c0_15] : memref<8x128xf32, #tpu.memory_space<vmem>>, vector<8x128xf32>
      tpu.vector_store %arg7[%c0_14, %c0_15], %26 {strides = array<i32>} : memref<8x128xf32, #tpu.memory_space<vmem>>, vector<8x128xf32>,
    } else {
    }
    %c0 = arith.constant 0 : index
    %c0_1 = arith.constant 0 : index
    %c0_2 = arith.constant 0 : index
    %3 = vector.load %arg3[%c0, %c0_1, %c0_2] : memref<1x8x128xf32, #tpu.memory_space<vmem>>, vector<1x8x128xf32>
    %4 = vector.shape_cast %3 : vector<1x8x128xf32> to vector<8x128xf32>
    %c128_i32 = arith.constant 128 : i32
    %5 = arith.muli %arg2, %c128_i32 : i32
    %6 = tpu.iota {dimensions = array<i32: 1>} : vector<8x128xi32>
    %7 = vector.broadcast %5 : i32 to vector<8x128xi32>
    %8 = arith.addi %7, %6 : vector<8x128xi32>
    %c8_i32 = arith.constant 8 : i32
    %9 = vector.broadcast %c8_i32 : i32 to vector<8x128xi32>
    %10 = arith.cmpi slt, %8, %9 : vector<8x128xi32>
    %cst = arith.constant 0.000000e+00 : f32
    %11 = vector.broadcast %cst : f32 to vector<8x128xf32>
    %12 = arith.select %10, %4, %11 : vector<8x128xi1>, vector<8x128xf32>
    %13 = arith.truncf %12 : vector<8x128xf32> to vector<8x128xbf16>
    %c128_i32_3 = arith.constant 128 : i32
    %14 = arith.muli %arg2, %c128_i32_3 : i32
    %15 = tpu.assume_multiple %14, 128 : i32
    %c0_4 = arith.constant 0 : index
    %16 = arith.index_cast %15 : i32 to index
    %c0_5 = arith.constant 0 : index
    %17 = vector.load %arg4[%c0_4, %16, %c0_5] : memref<1x128x128xbf16, #tpu.memory_space<vmem>>, vector<1x128x128xbf16>
    %18 = vector.shape_cast %17 : vector<1x128x128xbf16> to vector<128x128xbf16>
    %c0_6 = arith.constant 0 : index
    %c0_7 = arith.constant 0 : index
    %19 = vector.load %arg7[%c0_6, %c0_7] : memref<8x128xf32, #tpu.memory_space<vmem>>, vector<8x128xf32>
    %cst_8 = arith.constant dense<0.000000e+00> : vector<8x128xf32>
    %20 = tpu.matmul %13, %18, %cst_8 {dimension_numbers = #tpu.dot_dimension_numbers<[1], [0], [0], [1], [0, 0, 1, 1], [], []>} : vector<8x128xbf16>, vector<128x128xbf16>, vector<8x128xf32> -> vector<8x128xf32>
    %21 = arith.addf %19, %20 : vector<8x128xf32>
    %c0_9 = arith.constant 0 : index
    %c0_10 = arith.constant 0 : index
    %22 = vector.load %arg7[%c0_9, %c0_10] : memref<8x128xf32, #tpu.memory_space<vmem>>, vector<8x128xf32>
    tpu.vector_store %arg7[%c0_9, %c0_10], %21 {strides = array<i32>} : memref<8x128xf32, #tpu.memory_space<vmem>>, vector<8x128xf32>,
    %c0_i32_11 = arith.constant 0 : i32
    %23 = arith.cmpi eq, %arg2, %c0_i32_11 : i32
    %24 = arith.extui %23 : i1 to i32
    %c0_i32_12 = arith.constant 0 : i32
    %25 = arith.cmpi ne, %24, %c0_i32_12 : i32
    scf.if %25 {
      %c0_13 = arith.constant 0 : index
      %c0_14 = arith.constant 0 : index
      %26 = vector.load %arg7[%c0_13, %c0_14] : memref<8x128xf32, #tpu.memory_space<vmem>>, vector<8x128xf32>
      %c0_15 = arith.constant 0 : index
      %c0_16 = arith.constant 0 : index
      %27 = vector.load %arg5[%c0_15, %c0_16] : memref<128x128xf32, #tpu.memory_space<vmem>>, vector<128x128xf32>
      %cst_17 = arith.constant dense<0.000000e+00> : vector<8x128xf32>
      %28 = tpu.matmul %26, %27, %cst_17 {dimension_numbers = #tpu.dot_dimension_numbers<[1], [0], [0], [1], [0, 0, 1, 1], [], []>} : vector<8x128xf32>, vector<128x128xf32>, vector<8x128xf32> -> vector<8x128xf32>
      %cst_18 = arith.constant 0.000000e+00 : f32
      %29 = vector.broadcast %cst_18 : f32 to vector<8x128xf32>
      %30 = arith.maximumf %28, %29 : vector<8x128xf32>
      %c0_19 = arith.constant 0 : index
      %c0_20 = arith.constant 0 : index
      %c0_21 = arith.constant 0 : index
      %31 = vector.load %arg6[%c0_19, %c0_20, %c0_21] : memref<1x8x128xf32, #tpu.memory_space<vmem>>, vector<1x8x128xf32>
      %32 = vector.shape_cast %31 : vector<1x8x128xf32> to vector<8x128xf32>
      %33 = vector.shape_cast %30 : vector<8x128xf32> to vector<1x8x128xf32>
      tpu.vector_store %arg6[%c0_19, %c0_20, %c0_21], %33 {strides = array<i32>} : memref<1x8x128xf32, #tpu.memory_space<vmem>>, vector<1x8x128xf32>,
    } else {
    }
    return
  }
  func.func @transform_0(%arg0: i32, %arg1: i32, %arg2: i32) -> (i32, i32, i32) {
    %c0_i32 = arith.constant 0 : i32
    return %arg0, %arg1, %arg2 : i32, i32, i32
  }
  func.func @transform_1(%arg0: i32, %arg1: i32, %arg2: i32) -> (i32, i32, i32) {
    %c0_i32 = arith.constant 0 : i32
    %c0_i32_0 = arith.constant 0 : i32
    %c0_i32_1 = arith.constant 0 : i32
    return %arg0, %c0_i32, %c0_i32_0 : i32, i32, i32
  }
  func.func @transform_2(%arg0: i32, %arg1: i32, %arg2: i32) -> (i32, i32) {
    %c0_i32 = arith.constant 0 : i32
    %c0_i32_0 = arith.constant 0 : i32
    %c0_i32_1 = arith.constant 0 : i32
    return %c0_i32, %c0_i32_0 : i32, i32
  }
  func.func @transform_3(%arg0: i32, %arg1: i32, %arg2: i32) -> (i32, i32, i32) {
    %c0_i32 = arith.constant 0 : i32
    %c0_i32_0 = arith.constant 0 : i32
    return %arg0, %arg1, %c0_i32 : i32, i32, i32
  }
}

</mosaic_0001>

<llo_original>
// kernel: tpu_custom_call.1
$region0: #{tpu_custom_call.1}
  #allocation0 [shape = 'u32[]', space=smem, size = 0x4, offset = 0x4, fixed_abs, tag = 'smem constant byte address 0x4 - core index']
  #allocation1 [shape = 'u32[72,128]{1,0:T(1,128)}', space=vmem, size = 0x9000, scoped, tag = 'internal scratch']
  #allocation2 [shape = 'f32[8,128]{1,0:T(8,128)}', space=vmem, size = 0x1000, scoped, tag = 'scratch operand']
  %s0 = inlined_call_operand.hbm [shape: f32[2,8,8], index: 0, kind: input, shape index: {}]
  %s1 = inlined_call_operand.hbm [shape: bf16[2,128,128], index: 1, kind: input, shape index: {}]
  %s2 = inlined_call_operand.hbm [shape: f32[128,128], index: 2, kind: input, shape index: {}]
  %s3 = inlined_call_operand.hbm [shape: f32[2,8,128], index: 3, kind: output, shape index: {}]
  %s4 = sld [smem:[#allocation0]]
  $region65: #{tpu_custom_call.1} parent=0
    _
  %s6 = ssub.s32 1, %s4
  %s7 = scalar_select 0, %s6, %s4
  $region1: #{tpu_custom_call.1} parent=0
    #allocation3 [shape = 'u8[8192]{0}', space=vmem, size = 0x2000, scoped, tag = 'input window, operand 0']
    #allocation4 [shape = 's32[2]{0}', space=sflag, size = 0x8, scoped, tag = 'scoped memory for tpu_custom_call.1']
    #allocation5 [shape = 's32[2]{0}', space=sflag, size = 0x8, scoped, tag = 'scoped memory for tpu_custom_call.1']
    #allocation6 [shape = 'u8[65536]{0}', space=vmem, size = 0x10000, scoped, tag = 'input window, operand 1']
    #allocation7 [shape = 's32[2]{0}', space=sflag, size = 0x8, scoped, tag = 'scoped memory for tpu_custom_call.1']
    #allocation8 [shape = 'u8[65536]{0}', space=vmem, size = 0x10000, scoped, tag = 'input window, operand 2, single buffered']
    #allocation9 [shape = 'u8[8192]{0}', space=vmem, size = 0x2000, scoped, tag = 'output window, operand 0']
    %8 = vsyncpa [#allocation4], 0
    %s9 = scalar_lea.sflag [#allocation4], 1
    %10 = vsyncpa %s9, 0
    %11 = vsyncpa [#allocation7], 0
    %s12 = scalar_lea.sflag [#allocation7], 1
    %13 = vsyncpa %s12, 0
    %14 = vsyncpa [#allocation5], 0
    %s15 = scalar_lea.sflag [#allocation5], 1
    %16 = vsyncpa %s15, 0
    loop: start=0, step=1, limit=4
    $region2: #{tpu_custom_call.1} parent=1 // loop_pre_header
      _
    $region3: #{tpu_custom_call.1} parent=1 // loop_header
      %s18 = sphi 0, %s22
      %p19 = scmp.ge.s32.totalorder %s18, 4
      %s25 = sphi 0, %s44
      %s26 = sphi 0, %s40
      %s27 = sphi 0, %s36
      %s28 = sphi 0, %s25
      %s29 = sphi 0, %s26
      %s30 = sphi 0, %s27
      %s31 = sphi 0, %s28
      %s32 = sphi 0, %s29
      %s33 = sphi 0, %s30
      %s51 = sphi 0, %s53
      %s54 = sphi 0, %s51
      %s55 = sphi 0, %s54
      %s71 = sphi 0, %s55
      %s77 = sphi 0, %s79
      %s80 = sphi 0, %s77
      %s81 = sphi 0, %s80
      %s97 = sphi 0, %s81
      %s101 = sphi 0, %s101
      %s103 = sphi 0, %s101
      %s104 = sphi 0, %s103
      %s118 = sphi 0, %s104
      %s126 = sphi 0, %s128
      %s129 = sphi 0, %s126
      %s130 = sphi 0, %s129
      %s146 = sphi 0, %s130
    $region4: #{tpu_custom_call.1} parent=1 // loop_header_branch
      %21 = sbr.rel (%p19) target = $region8
    $region5: #{tpu_custom_call.1} parent=1 // loop_body
      %s23 = ssub.s32 %s18, 1
      %s24 = ssub.s32 %s18, 2
      %s34 = sadd.s32 1, %s27
      %p35 = scmp.ge.s32.totalorder %s34, 1
      %s36 = scalar_select %p35, 0, %s34
      %s37 = sadd.s32 1, %s26
      %s38 = scalar_select %p35, %s37, %s26
      %p39 = scmp.ge.s32.totalorder %s38, 1
      %s40 = scalar_select %p39, 0, %s38
      %s41 = sadd.s32 1, %s25
      %s42 = scalar_select %p39, %s41, %s25
      %p43 = scmp.ge.s32.totalorder %s42, 2
      %s44 = scalar_select %p43, 0, %s42
      %s45 = ssub.s32 %s25, %s44
      %s46 = ssub.s32 %s26, %s40
      %s47 = sor.u32 %s45, %s46
      %s48 = ssub.s32 %s27, %s36
      %s49 = sor.u32 %s47, %s48
      %p50 = scmp.eq.s32.totalorder %s49, 0
      %s52 = sadd.s32 %s51, 1
      %s53 = scalar_select %p50, %s51, %s52
      %p56 = pneg %p50
      %p57 = scmp.eq.s32.totalorder %s18, 1
      %p58 = por %p56, %p57
      %p59 = scmp.ne.s32.totalorder %s51, %s54
      %p60 = scmp.eq.s32.totalorder %s18, 0
      %p61 = por %p59, %p60
      %p62 = scmp.ne.s32.totalorder %s51, %s54
      %p63 = scmp.eq.s32.totalorder %s23, 1
      %p64 = por %p62, %p63
      %p65 = scmp.ne.s32.totalorder %s54, %s55
      %p66 = scmp.eq.s32.totalorder %s23, 0
      %p67 = por %p65, %p66
      %p68 = scmp.ne.s32.totalorder %s54, %s55
      %p69 = scmp.eq.s32.totalorder %s24, 1
      %p70 = por %p68, %p69
      %p72 = scmp.ne.s32.totalorder %s55, %s71
      %p73 = scmp.eq.s32.totalorder %s24, 0
      %p74 = por %p72, %p73
      %s75 = ssub.s32 %s25, %s44
      %p76 = scmp.eq.s32.totalorder %s75, 0
      %s78 = sadd.s32 %s77, 1
      %s79 = scalar_select %p76, %s77, %s78
      %p82 = pneg %p76
      %p83 = scmp.eq.s32.totalorder %s18, 1
      %p84 = por %p82, %p83
      %p85 = scmp.ne.s32.totalorder %s77, %s80
      %p86 = scmp.eq.s32.totalorder %s18, 0
      %p87 = por %p85, %p86
      %p88 = scmp.ne.s32.totalorder %s77, %s80
      %p89 = scmp.eq.s32.totalorder %s23, 1
      %p90 = por %p88, %p89
      %p91 = scmp.ne.s32.totalorder %s80, %s81
      %p92 = scmp.eq.s32.totalorder %s23, 0
      %p93 = por %p91, %p92
      %p94 = scmp.ne.s32.totalorder %s80, %s81
      %p95 = scmp.eq.s32.totalorder %s24, 1
      %p96 = por %p94, %p95
      %p98 = scmp.ne.s32.totalorder %s81, %s97
      %p99 = scmp.eq.s32.totalorder %s24, 0
      %p100 = por %p98, %p99
      %s102 = sadd.s32 %s101, 1
      %p105 = scmp.eq.s32.totalorder %s18, 1
      %p106 = scmp.ne.s32.totalorder %s101, %s103
      %p107 = scmp.eq.s32.totalorder %s18, 0
      %p108 = por %p106, %p107
      %p109 = scmp.ne.s32.totalorder %s101, %s103
      %p110 = scmp.eq.s32.totalorder %s23, 1
      %p111 = por %p109, %p110
      %p112 = scmp.ne.s32.totalorder %s103, %s104
      %p113 = scmp.eq.s32.totalorder %s23, 0
      %p114 = por %p112, %p113
      %p115 = scmp.ne.s32.totalorder %s103, %s104
      %p116 = scmp.eq.s32.totalorder %s24, 1
      %p117 = por %p115, %p116
      %p119 = scmp.ne.s32.totalorder %s104, %s118
      %p120 = scmp.eq.s32.totalorder %s24, 0
      %p121 = por %p119, %p120
      %s122 = ssub.s32 %s25, %s44
      %s123 = ssub.s32 %s26, %s40
      %s124 = sor.u32 %s122, %s123
      %p125 = scmp.eq.s32.totalorder %s124, 0
      %s127 = sadd.s32 %s126, 1
      %s128 = scalar_select %p125, %s126, %s127
      %p131 = pneg %p125
      %p132 = scmp.eq.s32.totalorder %s18, 1
      %p133 = por %p131, %p132
      %p134 = scmp.ne.s32.totalorder %s126, %s129
      %p135 = scmp.eq.s32.totalorder %s18, 0
      %p136 = por %p134, %p135
      %p137 = scmp.ne.s32.totalorder %s126, %s129
      %p138 = scmp.eq.s32.totalorder %s23, 1
      %p139 = por %p137, %p138
      %p140 = scmp.ne.s32.totalorder %s129, %s130
      %p141 = scmp.eq.s32.totalorder %s23, 0
      %p142 = por %p140, %p141
      %p143 = scmp.ne.s32.totalorder %s129, %s130
      %p144 = scmp.eq.s32.totalorder %s24, 1
      %p145 = por %p143, %p144
      %p147 = scmp.ne.s32.totalorder %s130, %s146
      %p148 = scmp.eq.s32.totalorder %s24, 0
      %p149 = por %p147, %p148
      %p150 = scmp.le.s32.totalorder 1, %s18
      %p151 = scmp.lt.s32.totalorder %s18, 3
      %p152 = pnand %p150, %p151
      %p153 = pneg %p152
      // Predicated region
      $region9: #{tpu_custom_call.1} parent=5 // pred_check
        _
      $region10: #{tpu_custom_call.1} parent=5 // pred_check_branch
        %155 = sbr.rel (%p152) target = $region12
      $region11: #{tpu_custom_call.1} parent=5 // pred_region
        %s156 = ssub.s32 %s18, 1
        // Predicated region
        $region13: #{tpu_custom_call.1} parent=11 // pred_check
          %p157 = pneg %p114
        $region14: #{tpu_custom_call.1} parent=11 // pred_check_branch
          %159 = sbr.rel (%p157) target = $region16
        $region15: #{tpu_custom_call.1} parent=11 // pred_region
          %161 = vsyncadd [#allocation7], 0
          %s162 = sshll.u32 %s2, 4
          %s163 = int_to_ptr.hbm [resolvable:$true] %s162
          %s164 = sshll.u32 [#allocation8], 4
          %s165 = int_to_ptr.vmem [resolvable:$true] %s164
          %170 = dma.hbm_to_vmem [thread:$0]  %s163, 2048, %s165, [#allocation7], 128, 128, 8
        $region16: #{tpu_custom_call.1} parent=11 // pred_fallthru
          _
      $region12: #{tpu_custom_call.1} parent=5 // pred_fallthru
        _
      %p171 = scmp.lt.s32.totalorder %s18, 2
      // Predicated region
      $region17: #{tpu_custom_call.1} parent=5 // pred_check
        %p172 = pneg %p171
      $region18: #{tpu_custom_call.1} parent=5 // pred_check_branch
        %174 = sbr.rel (%p172) target = $region20
      $region19: #{tpu_custom_call.1} parent=5 // pred_region
        // Predicated region
        $region21: #{tpu_custom_call.1} parent=19 // pred_check
          %p175 = pneg %p61
        $region22: #{tpu_custom_call.1} parent=19 // pred_check_branch
          %177 = sbr.rel (%p175) target = $region24
        $region23: #{tpu_custom_call.1} parent=19 // pred_region
          %s178 = sand.u32 %s51, 1
          %s179 = scalar_lea.sflag [#allocation4], %s178
          %s180 = sand.u32 %s51, 1
          %s181 = smul.addr %s180, 8
          %s182 = scalar_lea.vmem [#allocation3], %s181
          %184 = vsyncadd %s179, 0
          %s185 = sadd.s32 %s27, %s26
          %s186 = sadd.s32 %s185, %s25
          %s187 = smul.addr %s186, 8
          %s188 = scalar_lea.hbm %s0, %s187
          %s190 = sshll.u32 %s188, 4
          %s191 = int_to_ptr.hbm [resolvable:$true] %s190
          %s192 = sshll.u32 %s182, 4
          %s193 = int_to_ptr.vmem [resolvable:$true] %s192
          %195 = dma.hbm_to_vmem [thread:$0]  %s191, 128, %s193, %s179
        $region24: #{tpu_custom_call.1} parent=19 // pred_fallthru
          _
        // Predicated region
        $region25: #{tpu_custom_call.1} parent=19 // pred_check
          %p196 = pneg %p87
        $region26: #{tpu_custom_call.1} parent=19 // pred_check_branch
          %198 = sbr.rel (%p196) target = $region28
        $region27: #{tpu_custom_call.1} parent=19 // pred_region
          %s199 = sand.u32 %s18, 1
          %s200 = scalar_lea.sflag [#allocation7], %s199
          %s201 = sand.u32 %s77, 1
          %s202 = smul.addr %s201, 64
          %s203 = scalar_lea.vmem [#allocation6], %s202
          %205 = vsyncadd %s200, 0
          %s206 = smul.addr %s25, 16
          %s207 = smul.addr %s206, 4
          %s208 = scalar_lea.hbm %s1, %s207
          %s209 = sshll.u32 %s208, 4
          %s210 = int_to_ptr.hbm [resolvable:$true] %s209
          %s211 = sshll.u32 %s203, 4
          %s212 = int_to_ptr.vmem [resolvable:$true] %s211
          %217 = dma.hbm_to_vmem [thread:$0]  %s210, 1024, %s212, %s200, 64, 64, 4
        $region28: #{tpu_custom_call.1} parent=19 // pred_fallthru
          _
      $region20: #{tpu_custom_call.1} parent=5 // pred_fallthru
        _
      %p218 = scmp.le.s32.totalorder 1, %s18
      %p219 = scmp.lt.s32.totalorder %s18, 3
      %p220 = pnand %p218, %p219
      %p221 = pneg %p220
      // Predicated region
      $region29: #{tpu_custom_call.1} parent=5 // pred_check
        _
      $region30: #{tpu_custom_call.1} parent=5 // pred_check_branch
        %223 = sbr.rel (%p220) target = $region32
      $region31: #{tpu_custom_call.1} parent=5 // pred_region
        %s224 = ssub.s32 %s18, 1
        %s225 = sand.u32 %s54, 1
        %s226 = scalar_lea.sflag [#allocation4], %s225
        %s227 = sand.u32 %s54, 1
        %s228 = smul.addr %s227, 8
        %s229 = scalar_lea.vmem [#allocation3], %s228
        // Predicated region
        $region33: #{tpu_custom_call.1} parent=31 // pred_check
          %p230 = pneg %p67
        $region34: #{tpu_custom_call.1} parent=31 // pred_check_branch
          %232 = sbr.rel (%p230) target = $region36
        $region35: #{tpu_custom_call.1} parent=31 // pred_region
          %234 = dma.done %s226, 128
        $region36: #{tpu_custom_call.1} parent=31 // pred_fallthru
          _
        %s235 = sand.u32 %s23, 1
        %s236 = scalar_lea.sflag [#allocation7], %s235
        %s237 = sand.u32 %s80, 1
        %s238 = smul.addr %s237, 64
        %s239 = scalar_lea.vmem [#allocation6], %s238
        // Predicated region
        $region37: #{tpu_custom_call.1} parent=31 // pred_check
          %p240 = pneg %p93
        $region38: #{tpu_custom_call.1} parent=31 // pred_check_branch
          %242 = sbr.rel (%p240) target = $region40
        $region39: #{tpu_custom_call.1} parent=31 // pred_region
          %244 = dma.done %s236, 1024
        $region40: #{tpu_custom_call.1} parent=31 // pred_fallthru
          _
        // Predicated region
        $region41: #{tpu_custom_call.1} parent=31 // pred_check
          %p245 = pneg %p114
        $region42: #{tpu_custom_call.1} parent=31 // pred_check_branch
          %247 = sbr.rel (%p245) target = $region44
        $region43: #{tpu_custom_call.1} parent=31 // pred_region
          %249 = dma.done [#allocation7], 2048
        $region44: #{tpu_custom_call.1} parent=31 // pred_fallthru
          _
        %s250 = sand.u32 %s54, 1
        %s251 = scalar_lea.sflag [#allocation4], %s250
        %s252 = sand.u32 %s54, 1
        %s253 = smul.addr %s252, 8
        %s254 = scalar_lea.vmem [#allocation3], %s253
        %p255 = pneg %p67
        %p256 = pneg %p64
        %s257 = sand.u32 %s23, 1
        %s258 = scalar_lea.sflag [#allocation7], %s257
        %s259 = sand.u32 %s80, 1
        %s260 = smul.addr %s259, 64
        %s261 = scalar_lea.vmem [#allocation6], %s260
        %p262 = pneg %p93
        %p263 = pneg %p90
        %p264 = pneg %p114
        %p265 = pneg %p111
        %p266 = pneg %p142
        %p267 = pneg %p139
        %s268 = sand.u32 %s129, 1
        %s269 = scalar_lea.sflag [#allocation5], %s268
        %s270 = sand.u32 %s129, 1
        %s271 = smul.addr %s270, 8
        %s272 = scalar_lea.vmem [#allocation9], %s271
        %p273 = scmp.eq.s32.totalorder %s30, 0
        // Predicated region
        $region45: #{tpu_custom_call.1} parent=31 // pred_check
          %p274 = pneg %p273
        $region46: #{tpu_custom_call.1} parent=31 // pred_check_branch
          %276 = sbr.rel (%p274) target = $region48
        $region47: #{tpu_custom_call.1} parent=31 // pred_region
          %277 = vst [vmem:[#allocation2] sm:$0xff] 0.0
        $region48: #{tpu_custom_call.1} parent=31 // pred_fallthru
          _
        %v278 = vld [vmem:[%s229] sm:$0xff]
        %s279 = smul.u32 %s30, 128
        %v280 = vlaneseq
        %v281 = vand.u32 %v280, 127
        %v282 = vstv %s279
        %v283 = vadd.s32 %v282, %v281
        %vm284 = vcmp.lt.s32.totalorder %v283, 8
        %v285 = vsel %vm284, %v278, 0.0
        %v286 = vpack.c.bf16 %v285, %v285
        %s287 = sshra.s32 %s279, 3
        %s288 = sand.u32 %s279, 7
        %s289 = smul.addr %s287, 4
        %s290 = scalar_lea.vmem %s239, %s289 [#allocation6]
        %v291 = vld [vmem:[%s290] sm:$0xf]
        %v292 = vld [vmem:[%s290 + $0x4] sm:$0xf]
        %v293 = vld [vmem:[%s290 + $0x8] sm:$0xf]
        %v294 = vld [vmem:[%s290 + $0xc] sm:$0xf]
        %v295 = vld [vmem:[%s290 + $0x10] sm:$0xf]
        %v296 = vld [vmem:[%s290 + $0x14] sm:$0xf]
        %v297 = vld [vmem:[%s290 + $0x18] sm:$0xf]
        %v298 = vld [vmem:[%s290 + $0x1c] sm:$0xf]
        %v299 = vld [vmem:[%s290 + $0x20] sm:$0xf]
        %v300 = vld [vmem:[%s290 + $0x24] sm:$0xf]
        %v301 = vld [vmem:[%s290 + $0x28] sm:$0xf]
        %v302 = vld [vmem:[%s290 + $0x2c] sm:$0xf]
        %v303 = vld [vmem:[%s290 + $0x30] sm:$0xf]
        %v304 = vld [vmem:[%s290 + $0x34] sm:$0xf]
        %v305 = vld [vmem:[%s290 + $0x38] sm:$0xf]
        %v306 = vld [vmem:[%s290 + $0x3c] sm:$0xf]
        %v307 = vld [vmem:[#allocation2] sm:$0xff]
        %v324 = vunpack.c.l.b16 %v291
        %v325 = vunpack.c.l.b16 %v292
        %v326 = vunpack.c.l.b16 %v293
        %v327 = vunpack.c.l.b16 %v294
        %v328 = vunpack.c.l.b16 %v295
        %v329 = vunpack.c.l.b16 %v296
        %v330 = vunpack.c.l.b16 %v297
        %v331 = vunpack.c.l.b16 %v298
        %v332 = vunpack.c.l.b16 %v299
        %v333 = vunpack.c.l.b16 %v300
        %v334 = vunpack.c.l.b16 %v301
        %v335 = vunpack.c.l.b16 %v302
        %v336 = vunpack.c.l.b16 %v303
        %v337 = vunpack.c.l.b16 %v304
        %v338 = vunpack.c.l.b16 %v305
        %v339 = vunpack.c.l.b16 %v306
        %v340 = vpack.c.b16 %v325, %v324
        %v341 = vpack.c.b16 %v327, %v326
        %v342 = vpack.c.b16 %v329, %v328
        %v343 = vpack.c.b16 %v331, %v330
        %v344 = vpack.c.b16 %v333, %v332
        %v345 = vpack.c.b16 %v335, %v334
        %v346 = vpack.c.b16 %v337, %v336
        %v347 = vpack.c.b16 %v339, %v338
        %356 = vmatpush.bf16.msra.mxu0 %v347
        %357 = vmatpush.bf16.msra.mxu0 %v346
        %358 = vmatpush.bf16.msra.mxu0 %v345
        %359 = vmatpush.bf16.msra.mxu0 %v344
        %360 = vmatpush.bf16.msra.mxu0 %v343
        %361 = vmatpush.bf16.msra.mxu0 %v342
        %362 = vmatpush.bf16.msra.mxu0 %v341
        %363 = vmatpush.bf16.msra.mxu0 %v340
        %364 = vmatmul.bf16.gmra.mxu0 %v286
        %v365 = vpop.f32.mrf.mxu0
        %v366 = vadd.f32 0.0, %v365
        %v367 = vpop.f32.mrf.mxu0
        %368 = vdwg.mxu0
        %v369 = vadd.f32 %v307, %v366
        %370 = vst [vmem:[#allocation2] sm:$0xff] %v369
        // Predicated region
        $region49: #{tpu_custom_call.1} parent=31 // pred_check
          %p371 = pneg %p273
        $region50: #{tpu_custom_call.1} parent=31 // pred_check_branch
          %373 = sbr.rel (%p371) target = $region52
        $region51: #{tpu_custom_call.1} parent=31 // pred_region
          %v374 = vld [vmem:[#allocation2] sm:$0xff]
          %v375 = vld [vmem:[#allocation8] sm:$0xff]
          %v376 = vld [vmem:[#allocation8 + $0x8] sm:$0xff]
          %v377 = vld [vmem:[#allocation8 + $0x10] sm:$0xff]
          %v378 = vld [vmem:[#allocation8 + $0x18] sm:$0xff]
          %v379 = vld [vmem:[#allocation8 + $0x20] sm:$0xff]
          %v380 = vld [vmem:[#allocation8 + $0x28] sm:$0xff]
          %v381 = vld [vmem:[#allocation8 + $0x30] sm:$0xff]
          %v382 = vld [vmem:[#allocation8 + $0x38] sm:$0xff]
          %v383 = vld [vmem:[#allocation8 + $0x40] sm:$0xff]
          %v384 = vld [vmem:[#allocation8 + $0x48] sm:$0xff]
          %v385 = vld [vmem:[#allocation8 + $0x50] sm:$0xff]
          %v386 = vld [vmem:[#allocation8 + $0x58] sm:$0xff]
          %v387 = vld [vmem:[#allocation8 + $0x60] sm:$0xff]
          %v388 = vld [vmem:[#allocation8 + $0x68] sm:$0xff]
          %v389 = vld [vmem:[#allocation8 + $0x70] sm:$0xff]
          %v390 = vld [vmem:[#allocation8 + $0x78] sm:$0xff]
          %391 = vmatpush.msra.mxu0 %v390
          %392 = vmatpush.msra.mxu0 %v389
          %393 = vmatpush.msra.mxu0 %v388
          %394 = vmatpush.msra.mxu0 %v387
          %395 = vmatpush.msra.mxu0 %v386
          %396 = vmatpush.msra.mxu0 %v385
          %397 = vmatpush.msra.mxu0 %v384
          %398 = vmatpush.msra.mxu0 %v383
          %399 = vmatpush.msra.mxu0 %v382
          %400 = vmatpush.msra.mxu0 %v381
          %401 = vmatpush.msra.mxu0 %v380
          %402 = vmatpush.msra.mxu0 %v379
          %403 = vmatpush.msra.mxu0 %v378
          %404 = vmatpush.msra.mxu0 %v377
          %405 = vmatpush.msra.mxu0 %v376
          %406 = vmatpush.msra.mxu0 %v375
          %407 = vmatmul.f32.gmra.mxu0 %v374
          %v408 = vpop.f32.mrf.mxu0
          %v409 = vadd.f32 0.0, %v408
          %410 = vdwg.mxu0
          %v411 = vmax.f32 %v409, 0.0
          %412 = vst [vmem:[%s272] sm:$0xff] %v411
        $region52: #{tpu_custom_call.1} parent=31 // pred_fallthru
          _
        %s413 = sand.u32 %s129, 1
        %s414 = scalar_lea.sflag [#allocation5], %s413
        %s415 = sand.u32 %s129, 1
        %s416 = smul.addr %s415, 8
        %s417 = scalar_lea.vmem [#allocation9], %s416
        // Predicated region
        $region53: #{tpu_custom_call.1} parent=31 // pred_check
          %p418 = pneg %p139
        $region54: #{tpu_custom_call.1} parent=31 // pred_check_branch
          %420 = sbr.rel (%p418) target = $region56
        $region55: #{tpu_custom_call.1} parent=31 // pred_region
          %422 = vsyncadd %s414, 0
          %s423 = sadd.s32 %s29, %s28
          %s424 = smul.addr %s423, 8
          %s425 = scalar_lea.hbm %s3, %s424
          %s427 = sshll.u32 %s417, 4
          %s428 = int_to_ptr.vmem [resolvable:$true] %s427
          %s429 = sshll.u32 %s425, 4
          %s430 = int_to_ptr.hbm [resolvable:$true] %s429
          %432 = dma.vmem_to_hbm [thread:$0]  %s428, 128, %s430, %s414
        $region56: #{tpu_custom_call.1} parent=31 // pred_fallthru
          _
      $region32: #{tpu_custom_call.1} parent=5 // pred_fallthru
        _
      %p433 = scmp.le.s32.totalorder 2, %s18
      // Predicated region
      $region57: #{tpu_custom_call.1} parent=5 // pred_check
        %p434 = pneg %p433
      $region58: #{tpu_custom_call.1} parent=5 // pred_check_branch
        %436 = sbr.rel (%p434) target = $region60
      $region59: #{tpu_custom_call.1} parent=5 // pred_region
        %s437 = ssub.s32 %s18, 2
        // Predicated region
        $region61: #{tpu_custom_call.1} parent=59 // pred_check
          %p438 = pneg %p145
        $region62: #{tpu_custom_call.1} parent=59 // pred_check_branch
          %440 = sbr.rel (%p438) target = $region64
        $region63: #{tpu_custom_call.1} parent=59 // pred_region
          %s441 = sand.u32 %s130, 1
          %s442 = scalar_lea.sflag [#allocation5], %s441
          %s443 = sand.u32 %s130, 1
          %s444 = smul.addr %s443, 8
          %s445 = scalar_lea.vmem [#allocation9], %s444
          %447 = dma.done %s442, 128
        $region64: #{tpu_custom_call.1} parent=59 // pred_fallthru
          _
      $region60: #{tpu_custom_call.1} parent=5 // pred_fallthru
        _
    $region6: #{tpu_custom_call.1} parent=1 // loop_footer
      %s22 = sadd.s32 1, %s18
    $region7: #{tpu_custom_call.1} parent=1 // loop_footer_branch
      %17 = sbr.rel target = $region3
    $region8: #{tpu_custom_call.1} parent=1 // loop_exit
      _
    %448 = vsyncpa [#allocation4], 1
    %s449 = scalar_lea.sflag [#allocation4], 1
    %450 = vsyncpa %s449, 1
    %451 = vsyncpa [#allocation7], 1
    %s452 = scalar_lea.sflag [#allocation7], 1
    %453 = vsyncpa %s452, 1
    %454 = vsyncpa [#allocation5], 1
    %s455 = scalar_lea.sflag [#allocation5], 1
    %456 = vsyncpa %s455, 1

</llo_original>
